<compile_context>
chip_gen: v7x
topology: tpu7x:2x2x1
jax: 0.10.0
libtpu: 0.0.40
codegen_flags: <defaults>
</compile_context>

<pallas_src>
import jax
import jax.numpy as jnp
from jax.experimental import pallas as pl
from jax.experimental.pallas import tpu as pltpu

_LANE = 128
_SUBLANE = 8
# Per grid step: (4 + 2 + 4) f32 fields * tile_r * 128 lanes * 4 B = 5 KiB * tile_r
# of HBM traffic, and ~10 KiB * tile_r of VMEM with double buffering.
# tile_r = 1024 -> ~5 MiB traffic / ~10 MiB VMEM per step: amortizes the
# ~0.35 us grid-step overhead and fits the 32 MiB scoped VMEM default on
# v5e / v6e / v7x.
_MAX_TILE_R = 1024
# Below this batch size the op is a few KiB of work; plain jnp (fusable by
# XLA) beats a Pallas launch + layout shuffles.
_FAST_PATH_B = 2048


def _round_up(x: int, m: int) -> int:
    return ((x + m - 1) // m) * m


def _bicycle_kernel_batch(scal_ref, s_ref, c_ref, o_ref):
    """Sublane-dense batched bicycle ODE.

    scal_ref: SMEM (2,)              = [wb/2, 1/wb]   (scalar prefetch)
    s_ref:    VMEM (4, tile_r, 128)  fields = [X, Y, THETA, V]
    c_ref:    VMEM (2, tile_r, 128)  fields = [STEER, ACCEL]
    o_ref:    VMEM (4, tile_r, 128)  fields = [dX, dY, dTHETA, dV]
    """
    half_wb = scal_ref[0]
    inv_wb = scal_ref[1]

    theta = s_ref[2, :, :]   # (tile_r, 128) full dense slabs
    v = s_ref[3, :, :]
    steer = c_ref[0, :, :]
    accel = c_ref[1, :, :]

    speed = v + half_wb
    o_ref[0, :, :] = speed * jnp.cos(theta)
    o_ref[1, :, :] = speed * jnp.sin(theta)
    o_ref[2, :, :] = (v * inv_wb) * jnp.tan(steer)
    o_ref[3, :, :] = accel


def bicycle_forward_soa(states_t, controls_t, wheelbase, *, max_tile_r=_MAX_TILE_R):
    """SoA entry point (preferred for perf): states_t (4, B), controls_t (2, B).

    Returns diff_t with shape (4, B).  Keeping SoA across the call boundary
    avoids the AoS<->SoA transposes that otherwise dominate HBM traffic.
    """
    states_t = jnp.asarray(states_t, jnp.float32)
    controls_t = jnp.asarray(controls_t, jnp.float32)
    wb = jnp.asarray(wheelbase, jnp.float32)

    B = states_t.shape[1]

    # Round B up to a multiple of 8*128 so the row axis is sublane-aligned;
    # this pads at most 1023 elements (negligible vs. the old full-tile pad).
    padded_b = _round_up(B, _SUBLANE * _LANE)
    if padded_b != B:
        states_t = jnp.pad(states_t, ((0, 0), (0, padded_b - B)))
        controls_t = jnp.pad(controls_t, ((0, 0), (0, padded_b - B)))

    R = padded_b // _LANE                      # number of 128-wide rows, multiple of 8
    s3 = states_t.reshape(4, R, _LANE)
    c3 = controls_t.reshape(2, R, _LANE)

    # >= 2 grid steps whenever possible (megacore sharding + DMA overlap),
    # capped so per-step VMEM stays small.  tile_r is a multiple of 8 and
    # never exceeds R (R >= 8 and R % 8 == 0 here).
    tile_r = min(int(max_tile_r), _round_up(pl.cdiv(R, 2), _SUBLANE))
    grid = (pl.cdiv(R, tile_r),)

    # Hoisted scalar math: [wb/2, 1/wb] -> SMEM via scalar prefetch.
    scal = jnp.stack([0.5 * wb, 1.0 / wb]).astype(jnp.float32)

    out3 = pl.pallas_call(
        _bicycle_kernel_batch,
        out_shape=jax.ShapeDtypeStruct((4, R, _LANE), jnp.float32),
        grid_spec=pltpu.PrefetchScalarGridSpec(
            num_scalar_prefetch=1,
            grid=grid,
            in_specs=[
                pl.BlockSpec((4, tile_r, _LANE), lambda i, scal: (0, i, 0)),
                pl.BlockSpec((2, tile_r, _LANE), lambda i, scal: (0, i, 0)),
            ],
            out_specs=pl.BlockSpec((4, tile_r, _LANE), lambda i, scal: (0, i, 0)),
        ),
        compiler_params=pltpu.CompilerParams(
            dimension_semantics=("parallel",),
        ),
    )(scal, s3, c3)

    return out3.reshape(4, padded_b)[:, :B]


def _jnp_batched(states, control_inputs, wb):
    theta, v = states[:, 2], states[:, 3]
    steer, accel = control_inputs[:, 0], control_inputs[:, 1]
    return jnp.stack(
        [(v + wb / 2) * jnp.cos(theta),
         (v + wb / 2) * jnp.sin(theta),
         v * jnp.tan(steer) / wb,
         accel], axis=1)


def bicycle_forward(states, control_inputs, wheelbase):
    """Pallas implementation of Bicycle.forward (PyTorch interface).

    states:         (B, 4) or (4,) float32
    control_inputs: (B, 2) or (2,) float32
    wheelbase:      python float / scalar parameter
    returns:        same shape as `states`
    """
    states = jnp.asarray(states, jnp.float32)
    control_inputs = jnp.asarray(control_inputs, jnp.float32)
    wb = jnp.asarray(wheelbase, jnp.float32)

    if states.ndim == 1:
        # Non-batch branch of the PyTorch module (note: NO wb/2 term).
        theta, v = states[2], states[3]
        steer, accel = control_inputs[0], control_inputs[1]
        return jnp.stack(
            [v * jnp.cos(theta),
             v * jnp.sin(theta),
             v * jnp.tan(steer) / wb,
             accel])

    B = states.shape[0]
    if B < _FAST_PATH_B:
        # Tiny batches: a Pallas launch + layout shuffles is pure overhead.
        return _jnp_batched(states, control_inputs, wb)

    # AoS (B,4)/(B,2) -> SoA (4,B)/(2,B); perf-sensitive callers should use
    # bicycle_forward_soa directly to skip these transposes.
    diff_t = bicycle_forward_soa(states.T, control_inputs.T, wb)
    return diff_t.T


def _reference_forward(states, control_inputs, wheelbase):
    """Pure-JAX reference mirroring the PyTorch module."""
    wb = jnp.float32(wheelbase)
    if states.ndim == 2:
        return _jnp_batched(states, control_inputs, wb)
    theta, v = states[2], states[3]
    steer, accel = control_inputs[0], control_inputs[1]
    return jnp.stack(
        [v * jnp.cos(theta),
         v * jnp.sin(theta),
         v * jnp.tan(steer) / wb,
         accel])


if __name__ == "__main__":
    key = jax.random.PRNGKey(0)
    k1, k2, k3, k4, k5, k6 = jax.random.split(key, 6)

    wheelbase = 2.5  # deterministic "parameter" init (nn.Parameter scalar)

    # --- Small batch: fused jnp fast path ---
    B = 8
    states = jax.random.normal(k1, (B, 4), dtype=jnp.float32)
    controls = 0.3 * jax.random.normal(k2, (B, 2), dtype=jnp.float32)
    out = jax.block_until_ready(bicycle_forward(states, controls, wheelbase))
    ref = _reference_forward(states, controls, wheelbase)
    assert out.shape == (B, 4)
    assert jnp.allclose(out, ref, atol=1e-5, rtol=1e-5), "batched (B=8) mismatch"

    # --- Medium batch: Pallas path via AoS interface (non-multiple of 128) ---
    B2 = 4133
    states2 = jax.random.normal(k3, (B2, 4), dtype=jnp.float32)
    controls2 = 0.3 * jax.random.normal(k4, (B2, 2), dtype=jnp.float32)
    out2 = jax.block_until_ready(bicycle_forward(states2, controls2, wheelbase))
    ref2 = _reference_forward(states2, controls2, wheelbase)
    assert out2.shape == (B2, 4)
    assert jnp.allclose(out2, ref2, atol=1e-5, rtol=1e-5), "batched (B=4133) mismatch"

    # --- SoA entry point (no transposes across the boundary) ---
    B3 = 2048
    states3 = jax.random.normal(k5, (4, B3), dtype=jnp.float32)
    controls3 = 0.3 * jax.random.normal(k6, (2, B3), dtype=jnp.float32)
    out3 = jax.block_until_ready(bicycle_forward_soa(states3, controls3, wheelbase))
    ref3 = _reference_forward(states3.T, controls3.T, wheelbase).T
    assert out3.shape == (4, B3)
    assert jnp.allclose(out3, ref3, atol=1e-5, rtol=1e-5), "SoA (B=2048) mismatch"

    # --- Non-batched path (plain jnp, matches PyTorch non-batch semantics) ---
    out1 = jax.block_until_ready(bicycle_forward(states[0], controls[0], wheelbase))
    ref1 = _reference_forward(states[0], controls[0], wheelbase)
    assert out1.shape == (4,)
    assert jnp.allclose(out1, ref1, atol=1e-5, rtol=1e-5), "single mismatch"

    print("KERNEL_OK")
</pallas_src>

<mosaic_0001>
module attributes {stable_mosaic.version = 11 : i64} {
  func.func @_bicycle_kernel_batch(%arg0: i32, %arg1: memref<2xf32, #tpu.memory_space<smem>>, %arg2: memref<4x24x128xf32, #tpu.memory_space<vmem>>, %arg3: memref<2x24x128xf32, #tpu.memory_space<vmem>>, %arg4: memref<4x24x128xf32, #tpu.memory_space<vmem>>) attributes {dimension_semantics = [#tpu.dimension_semantics<parallel>], iteration_bounds = array<i64: 2>, scalar_prefetch = 1 : i64, scratch_operands = 0 : i64, tpu.core_type = #tpu.core_type<tc>, window_params = [{transform_indices = @transform_0, window_bounds = array<i64: 4, 24, 128>}, {transform_indices = @transform_1, window_bounds = array<i64: 2, 24, 128>}, {transform_indices = @transform_2, window_bounds = array<i64: 4, 24, 128>}]} {
    %c0 = arith.constant 0 : index
    %0 = memref.load %arg1[%c0] : memref<2xf32, #tpu.memory_space<smem>>
    %c1 = arith.constant 1 : index
    %1 = memref.load %arg1[%c1] : memref<2xf32, #tpu.memory_space<smem>>
    %c2 = arith.constant 2 : index
    %c0_0 = arith.constant 0 : index
    %c0_1 = arith.constant 0 : index
    %2 = vector.load %arg2[%c2, %c0_0, %c0_1] : memref<4x24x128xf32, #tpu.memory_space<vmem>>, vector<1x24x128xf32>
    %3 = vector.shape_cast %2 : vector<1x24x128xf32> to vector<24x128xf32>
    %c3 = arith.constant 3 : index
    %c0_2 = arith.constant 0 : index
    %c0_3 = arith.constant 0 : index
    %4 = vector.load %arg2[%c3, %c0_2, %c0_3] : memref<4x24x128xf32, #tpu.memory_space<vmem>>, vector<1x24x128xf32>
    %5 = vector.shape_cast %4 : vector<1x24x128xf32> to vector<24x128xf32>
    %c0_4 = arith.constant 0 : index
    %c0_5 = arith.constant 0 : index
    %c0_6 = arith.constant 0 : index
    %6 = vector.load %arg3[%c0_4, %c0_5, %c0_6] : memref<2x24x128xf32, #tpu.memory_space<vmem>>, vector<1x24x128xf32>
    %7 = vector.shape_cast %6 : vector<1x24x128xf32> to vector<24x128xf32>
    %c1_7 = arith.constant 1 : index
    %c0_8 = arith.constant 0 : index
    %c0_9 = arith.constant 0 : index
    %8 = vector.load %arg3[%c1_7, %c0_8, %c0_9] : memref<2x24x128xf32, #tpu.memory_space<vmem>>, vector<1x24x128xf32>
    %9 = vector.shape_cast %8 : vector<1x24x128xf32> to vector<24x128xf32>
    %10 = vector.broadcast %0 : f32 to vector<24x128xf32>
    %11 = arith.addf %5, %10 : vector<24x128xf32>
    %12 = math.cos %3 : vector<24x128xf32>
    %13 = arith.mulf %11, %12 : vector<24x128xf32>
    %c0_10 = arith.constant 0 : index
    %c0_11 = arith.constant 0 : index
    %c0_12 = arith.constant 0 : index
    %14 = vector.load %arg4[%c0_10, %c0_11, %c0_12] : memref<4x24x128xf32, #tpu.memory_space<vmem>>, vector<1x24x128xf32>
    %15 = vector.shape_cast %14 : vector<1x24x128xf32> to vector<24x128xf32>
    %16 = vector.shape_cast %13 : vector<24x128xf32> to vector<1x24x128xf32>
    tpu.vector_store %arg4[%c0_10, %c0_11, %c0_12], %16 {strides = array<i32>} : memref<4x24x128xf32, #tpu.memory_space<vmem>>, vector<1x24x128xf32>,
    %17 = math.sin %3 : vector<24x128xf32>
    %18 = arith.mulf %11, %17 : vector<24x128xf32>
    %c1_13 = arith.constant 1 : index
    %c0_14 = arith.constant 0 : index
    %c0_15 = arith.constant 0 : index
    %19 = vector.load %arg4[%c1_13, %c0_14, %c0_15] : memref<4x24x128xf32, #tpu.memory_space<vmem>>, vector<1x24x128xf32>
    %20 = vector.shape_cast %19 : vector<1x24x128xf32> to vector<24x128xf32>
    %21 = vector.shape_cast %18 : vector<24x128xf32> to vector<1x24x128xf32>
    tpu.vector_store %arg4[%c1_13, %c0_14, %c0_15], %21 {strides = array<i32>} : memref<4x24x128xf32, #tpu.memory_space<vmem>>, vector<1x24x128xf32>,
    %22 = vector.broadcast %1 : f32 to vector<24x128xf32>
    %23 = arith.mulf %5, %22 : vector<24x128xf32>
    %24 = math.tan %7 : vector<24x128xf32>
    %25 = arith.mulf %23, %24 : vector<24x128xf32>
    %c2_16 = arith.constant 2 : index
    %c0_17 = arith.constant 0 : index
    %c0_18 = arith.constant 0 : index
    %26 = vector.load %arg4[%c2_16, %c0_17, %c0_18] : memref<4x24x128xf32, #tpu.memory_space<vmem>>, vector<1x24x128xf32>
    %27 = vector.shape_cast %26 : vector<1x24x128xf32> to vector<24x128xf32>
    %28 = vector.shape_cast %25 : vector<24x128xf32> to vector<1x24x128xf32>
    tpu.vector_store %arg4[%c2_16, %c0_17, %c0_18], %28 {strides = array<i32>} : memref<4x24x128xf32, #tpu.memory_space<vmem>>, vector<1x24x128xf32>,
    %c3_19 = arith.constant 3 : index
    %c0_20 = arith.constant 0 : index
    %c0_21 = arith.constant 0 : index
    %29 = vector.load %arg4[%c3_19, %c0_20, %c0_21] : memref<4x24x128xf32, #tpu.memory_space<vmem>>, vector<1x24x128xf32>
    %30 = vector.shape_cast %29 : vector<1x24x128xf32> to vector<24x128xf32>
    %31 = vector.shape_cast %9 : vector<24x128xf32> to vector<1x24x128xf32>
    tpu.vector_store %arg4[%c3_19, %c0_20, %c0_21], %31 {strides = array<i32>} : memref<4x24x128xf32, #tpu.memory_space<vmem>>, vector<1x24x128xf32>,
    return
  }
  func.func @transform_0(%arg0: i32, %arg1: memref<2xf32, #tpu.memory_space<smem>>) -> (i32, i32, i32) {
    %c0_i32 = arith.constant 0 : i32
    %c0_i32_0 = arith.constant 0 : i32
    %c0_i32_1 = arith.constant 0 : i32
    return %c0_i32, %arg0, %c0_i32_0 : i32, i32, i32
  }
  func.func @transform_1(%arg0: i32, %arg1: memref<2xf32, #tpu.memory_space<smem>>) -> (i32, i32, i32) {
    %c0_i32 = arith.constant 0 : i32
    %c0_i32_0 = arith.constant 0 : i32
    %c0_i32_1 = arith.constant 0 : i32
    return %c0_i32, %arg0, %c0_i32_0 : i32, i32, i32
  }
  func.func @transform_2(%arg0: i32, %arg1: memref<2xf32, #tpu.memory_space<smem>>) -> (i32, i32, i32) {
    %c0_i32 = arith.constant 0 : i32
    %c0_i32_0 = arith.constant 0 : i32
    %c0_i32_1 = arith.constant 0 : i32
    return %c0_i32, %arg0, %c0_i32_0 : i32, i32, i32
  }
}

</mosaic_0001>

<llo_original>
// kernel: tpu_custom_call.1
$region0: #{tpu_custom_call.1}
  #allocation0 [shape = 'u32[]', space=smem, size = 0x4, offset = 0x4, fixed_abs, tag = 'smem constant byte address 0x4 - core index']
  #allocation1 [shape = 'u32[144,128]{1,0:T(1,128)}', space=vmem, size = 0x12000, scoped, tag = 'internal scratch']
  #allocation2 [shape = 's32[1]{0}', space=sflag, size = 0x4, scoped, tag = 'scoped memory for tpu_custom_call.1']
  #allocation3 [shape = 'u8[512]{0}', space=smem, size = 0x200, scoped, tag = 'prefetched SMEM operand 0']
  #allocation10 [shape = 's32[]', space=sflag, size = 0x4, offset = 0, fixed_abs, tag = 'sflag constant byte address 0x0 - dummy sync flag']
  #allocation12 [shape = 's32[]', space=sflag, size = 0x4, offset = 0, fixed_abs, tag = 'sflag constant byte address 0x0 - dummy sync flag']
  #allocation14 [shape = 's32[]', space=sflag, size = 0x4, offset = 0, fixed_abs, tag = 'sflag constant byte address 0x0 - dummy sync flag']
  %s0 = inlined_call_operand.hbm [shape: f32[2], index: 0, kind: input, shape index: {}]
  %s1 = inlined_call_operand.hbm [shape: f32[4,40,128], index: 1, kind: input, shape index: {}]
  %s2 = inlined_call_operand.hbm [shape: f32[2,40,128], index: 2, kind: input, shape index: {}]
  %s3 = inlined_call_operand.hbm [shape: f32[4,40,128], index: 3, kind: output, shape index: {}]
  %s4 = sld [smem:[#allocation0]]
  $region49: #{tpu_custom_call.1} parent=0
    _
  %s6 = ssub.s32 1, %s4
  %s7 = scalar_select 0, %s6, %s4
  %9 = dma.hbm_to_smem %s0, 16, [#allocation3], [#allocation2]
  %10 = dma.done [#allocation2], 16
  %11 = sfence
  $region1: #{tpu_custom_call.1} parent=0
    #allocation4 [shape = 'u8[98304]{0}', space=vmem, size = 0x18000, scoped, tag = 'input window, operand 1']
    #allocation5 [shape = 's32[2]{0}', space=sflag, size = 0x8, scoped, tag = 'scoped memory for tpu_custom_call.1']
    #allocation6 [shape = 's32[2]{0}', space=sflag, size = 0x8, scoped, tag = 'scoped memory for tpu_custom_call.1']
    #allocation7 [shape = 'u8[49152]{0}', space=vmem, size = 0xc000, scoped, tag = 'input window, operand 2']
    #allocation8 [shape = 's32[2]{0}', space=sflag, size = 0x8, scoped, tag = 'scoped memory for tpu_custom_call.1']
    #allocation9 [shape = 'u8[98304]{0}', space=vmem, size = 0x18000, scoped, tag = 'output window, operand 0']
    %12 = vsyncpa [#allocation5], 0
    %s13 = scalar_lea.sflag [#allocation5], 1
    %14 = vsyncpa %s13, 0
    %15 = vsyncpa [#allocation8], 0
    %s16 = scalar_lea.sflag [#allocation8], 1
    %17 = vsyncpa %s16, 0
    %18 = vsyncpa [#allocation6], 0
    %s19 = scalar_lea.sflag [#allocation6], 1
    %20 = vsyncpa %s19, 0
    loop: start=0, step=1, limit=4
    $region2: #{tpu_custom_call.1} parent=1 // loop_pre_header
      _
    $region3: #{tpu_custom_call.1} parent=1 // loop_header
      %s22 = sphi 0, %s26
      %p23 = scmp.ge.s32.totalorder %s22, 4
      %s32 = sphi 0, %s34
      %s35 = sphi 0, %s32
      %s36 = sphi 0, %s35
      %s52 = sphi 0, %s36
      %s58 = sphi 0, %s60
      %s61 = sphi 0, %s58
      %s62 = sphi 0, %s61
      %s78 = sphi 0, %s62
      %s84 = sphi 0, %s86
      %s87 = sphi 0, %s84
      %s88 = sphi 0, %s87
      %s104 = sphi 0, %s88
    $region4: #{tpu_custom_call.1} parent=1 // loop_header_branch
      %25 = sbr.rel (%p23) target = $region8
    $region5: #{tpu_custom_call.1} parent=1 // loop_body
      %s27 = ssub.s32 %s22, 1
      %s28 = ssub.s32 %s22, 2
      %s29 = sadd.s32 %s22, 1
      %s30 = ssub.s32 %s22, %s29
      %p31 = scmp.eq.s32.totalorder %s30, 0
      %s33 = sadd.s32 %s32, 1
      %s34 = scalar_select %p31, %s32, %s33
      %p37 = pneg %p31
      %p38 = scmp.eq.s32.totalorder %s22, 1
      %p39 = por %p37, %p38
      %p40 = scmp.ne.s32.totalorder %s32, %s35
      %p41 = scmp.eq.s32.totalorder %s22, 0
      %p42 = por %p40, %p41
      %p43 = scmp.ne.s32.totalorder %s32, %s35
      %p44 = scmp.eq.s32.totalorder %s27, 1
      %p45 = por %p43, %p44
      %p46 = scmp.ne.s32.totalorder %s35, %s36
      %p47 = scmp.eq.s32.totalorder %s27, 0
      %p48 = por %p46, %p47
      %p49 = scmp.ne.s32.totalorder %s35, %s36
      %p50 = scmp.eq.s32.totalorder %s28, 1
      %p51 = por %p49, %p50
      %p53 = scmp.ne.s32.totalorder %s36, %s52
      %p54 = scmp.eq.s32.totalorder %s28, 0
      %p55 = por %p53, %p54
      %s56 = ssub.s32 %s22, %s29
      %p57 = scmp.eq.s32.totalorder %s56, 0
      %s59 = sadd.s32 %s58, 1
      %s60 = scalar_select %p57, %s58, %s59
      %p63 = pneg %p57
      %p64 = scmp.eq.s32.totalorder %s22, 1
      %p65 = por %p63, %p64
      %p66 = scmp.ne.s32.totalorder %s58, %s61
      %p67 = scmp.eq.s32.totalorder %s22, 0
      %p68 = por %p66, %p67
      %p69 = scmp.ne.s32.totalorder %s58, %s61
      %p70 = scmp.eq.s32.totalorder %s27, 1
      %p71 = por %p69, %p70
      %p72 = scmp.ne.s32.totalorder %s61, %s62
      %p73 = scmp.eq.s32.totalorder %s27, 0
      %p74 = por %p72, %p73
      %p75 = scmp.ne.s32.totalorder %s61, %s62
      %p76 = scmp.eq.s32.totalorder %s28, 1
      %p77 = por %p75, %p76
      %p79 = scmp.ne.s32.totalorder %s62, %s78
      %p80 = scmp.eq.s32.totalorder %s28, 0
      %p81 = por %p79, %p80
      %s82 = ssub.s32 %s22, %s29
      %p83 = scmp.eq.s32.totalorder %s82, 0
      %s85 = sadd.s32 %s84, 1
      %s86 = scalar_select %p83, %s84, %s85
      %p89 = pneg %p83
      %p90 = scmp.eq.s32.totalorder %s22, 1
      %p91 = por %p89, %p90
      %p92 = scmp.ne.s32.totalorder %s84, %s87
      %p93 = scmp.eq.s32.totalorder %s22, 0
      %p94 = por %p92, %p93
      %p95 = scmp.ne.s32.totalorder %s84, %s87
      %p96 = scmp.eq.s32.totalorder %s27, 1
      %p97 = por %p95, %p96
      %p98 = scmp.ne.s32.totalorder %s87, %s88
      %p99 = scmp.eq.s32.totalorder %s27, 0
      %p100 = por %p98, %p99
      %p101 = scmp.ne.s32.totalorder %s87, %s88
      %p102 = scmp.eq.s32.totalorder %s28, 1
      %p103 = por %p101, %p102
      %p105 = scmp.ne.s32.totalorder %s88, %s104
      %p106 = scmp.eq.s32.totalorder %s28, 0
      %p107 = por %p105, %p106
      %p108 = scmp.le.s32.totalorder 1, %s22
      %p109 = scmp.lt.s32.totalorder %s22, 3
      %p110 = pnand %p108, %p109
      %p111 = pneg %p110
      // Predicated region
      $region9: #{tpu_custom_call.1} parent=5 // pred_check
        _
      $region10: #{tpu_custom_call.1} parent=5 // pred_check_branch
        %113 = sbr.rel (%p110) target = $region12
      $region11: #{tpu_custom_call.1} parent=5 // pred_region
        %s114 = ssub.s32 %s22, 1
      $region12: #{tpu_custom_call.1} parent=5 // pred_fallthru
        _
      %p115 = scmp.lt.s32.totalorder %s22, 2
      // Predicated region
      $region13: #{tpu_custom_call.1} parent=5 // pred_check
        %p116 = pneg %p115
      $region14: #{tpu_custom_call.1} parent=5 // pred_check_branch
        %118 = sbr.rel (%p116) target = $region16
      $region15: #{tpu_custom_call.1} parent=5 // pred_region
        // Predicated region
        $region17: #{tpu_custom_call.1} parent=15 // pred_check
          %p119 = pneg %p42
        $region18: #{tpu_custom_call.1} parent=15 // pred_check_branch
          %121 = sbr.rel (%p119) target = $region20
        $region19: #{tpu_custom_call.1} parent=15 // pred_region
          #allocation11 [shape = 'u32[6]{0}', space=smem, size = 0x18, scoped, tag = 'DMA stride descriptor']
          %s122 = sand.u32 %s32, 1
          %s123 = scalar_lea.sflag [#allocation5], %s122
          %s124 = sand.u32 %s32, 1
          %s125 = smul.addr %s124, 96
          %s126 = scalar_lea.vmem [#allocation4], %s125
          %s127 = smul.u32 3, %s22
          %s128 = ssub.s32 5, %s127
          %p129 = scmp.lt.s32.totalorder %s128, 3
          %s130 = scalar_select %p129, %s128, 3
          %s131 = smul.u32 512, %s130
          %s133 = ssub.s32 1536, %s131
          %134 = vsyncadd %s123, %s133
          %p135 = scmp.ne.s32.totalorder 0, %s131
          %s136 = smul.addr %s127, 128
          %s137 = scalar_lea.hbm %s1, %s136
          %s138 = smul.u32 8, %s130
          %s139 = smul.u32 %s138, 4
          %s141 = sshll.u32 1, 14
          %s142 = sxor.u32 4294967295, %s141
          %s144 = sld [smem:[#allocation0]]
          %s145 = sadd.s32 2, %s144
          %s147 = sshll.u32 7, 26
          %s148 = sxor.u32 4294967295, %s147
          %s149 = sand.u32 0, %s148
          %s150 = sshll.u32 %s145, 26
          %s151 = sor.u32 %s149, %s150
          %s152 = sshll.u32 %s126, 4
          %s153 = int_to_ptr.vmem [resolvable:$true] %s152
          %s154 = sshll.u32 %s139, 4
          %159 = sst [smem:[#allocation11]] 640
          %s160 = scalar_lea.smem [#allocation11], 1
          %161 = sst [smem:[%s160]] 384
          %s162 = scalar_lea.smem [#allocation11], 2
          %163 = sst [smem:[%s162]] %s130
          %s164 = scalar_lea.smem [#allocation11], 3
          %165 = sst [smem:[%s164]] 128
          %s166 = scalar_lea.smem [#allocation11], 4
          %167 = sst [smem:[%s166]] 128
          %s168 = scalar_lea.smem [#allocation11], 5
          %169 = sst [smem:[%s168]] 8
          %171 = dma.general (%p135), %s137, %s154, %s153, %s123, [#allocation10], [#allocation11], %s151, 0
        $region20: #{tpu_custom_call.1} parent=15 // pred_fallthru
          _
        // Predicated region
        $region21: #{tpu_custom_call.1} parent=15 // pred_check
          %p172 = pneg %p68
        $region22: #{tpu_custom_call.1} parent=15 // pred_check_branch
          %174 = sbr.rel (%p172) target = $region24
        $region23: #{tpu_custom_call.1} parent=15 // pred_region
          #allocation13 [shape = 'u32[6]{0}', space=smem, size = 0x18, scoped, tag = 'DMA stride descriptor']
          %s175 = sand.u32 %s58, 1
          %s176 = scalar_lea.sflag [#allocation8], %s175
          %s177 = sand.u32 %s58, 1
          %s178 = smul.addr %s177, 48
          %s179 = scalar_lea.vmem [#allocation7], %s178
          %s180 = smul.u32 3, %s22
          %s181 = ssub.s32 5, %s180
          %p182 = scmp.lt.s32.totalorder %s181, 3
          %s183 = scalar_select %p182, %s181, 3
          %s184 = smul.u32 256, %s183
          %s186 = ssub.s32 768, %s184
          %187 = vsyncadd %s176, %s186
          %p188 = scmp.ne.s32.totalorder 0, %s184
          %s189 = smul.addr %s180, 128
          %s190 = scalar_lea.hbm %s2, %s189
          %s191 = smul.u32 8, %s183
          %s192 = smul.u32 %s191, 2
          %s194 = sshll.u32 1, 14
          %s195 = sxor.u32 4294967295, %s194
          %s197 = sld [smem:[#allocation0]]
          %s198 = sadd.s32 2, %s197
          %s200 = sshll.u32 7, 26
          %s201 = sxor.u32 4294967295, %s200
          %s202 = sand.u32 0, %s201
          %s203 = sshll.u32 %s198, 26
          %s204 = sor.u32 %s202, %s203
          %s205 = sshll.u32 %s179, 4
          %s206 = int_to_ptr.vmem [resolvable:$true] %s205
          %s207 = sshll.u32 %s192, 4
          %212 = sst [smem:[#allocation13]] 640
          %s213 = scalar_lea.smem [#allocation13], 1
          %214 = sst [smem:[%s213]] 384
          %s215 = scalar_lea.smem [#allocation13], 2
          %216 = sst [smem:[%s215]] %s183
          %s217 = scalar_lea.smem [#allocation13], 3
          %218 = sst [smem:[%s217]] 128
          %s219 = scalar_lea.smem [#allocation13], 4
          %220 = sst [smem:[%s219]] 128
          %s221 = scalar_lea.smem [#allocation13], 5
          %222 = sst [smem:[%s221]] 8
          %224 = dma.general (%p188), %s190, %s207, %s206, %s176, [#allocation12], [#allocation13], %s204, 0
        $region24: #{tpu_custom_call.1} parent=15 // pred_fallthru
          _
      $region16: #{tpu_custom_call.1} parent=5 // pred_fallthru
        _
      %p225 = scmp.le.s32.totalorder 1, %s22
      %p226 = scmp.lt.s32.totalorder %s22, 3
      %p227 = pnand %p225, %p226
      %p228 = pneg %p227
      // Predicated region
      $region25: #{tpu_custom_call.1} parent=5 // pred_check
        _
      $region26: #{tpu_custom_call.1} parent=5 // pred_check_branch
        %230 = sbr.rel (%p227) target = $region28
      $region27: #{tpu_custom_call.1} parent=5 // pred_region
        %s231 = ssub.s32 %s22, 1
        %s232 = sand.u32 %s35, 1
        %s233 = scalar_lea.sflag [#allocation5], %s232
        %s234 = sand.u32 %s35, 1
        %s235 = smul.addr %s234, 96
        %s236 = scalar_lea.vmem [#allocation4], %s235
        // Predicated region
        $region29: #{tpu_custom_call.1} parent=27 // pred_check
          %p237 = pneg %p48
        $region30: #{tpu_custom_call.1} parent=27 // pred_check_branch
          %239 = sbr.rel (%p237) target = $region32
        $region31: #{tpu_custom_call.1} parent=27 // pred_region
          %240 = dma.done %s233, 1536
        $region32: #{tpu_custom_call.1} parent=27 // pred_fallthru
          _
        %s241 = sand.u32 %s61, 1
        %s242 = scalar_lea.sflag [#allocation8], %s241
        %s243 = sand.u32 %s61, 1
        %s244 = smul.addr %s243, 48
        %s245 = scalar_lea.vmem [#allocation7], %s244
        // Predicated region
        $region33: #{tpu_custom_call.1} parent=27 // pred_check
          %p246 = pneg %p74
        $region34: #{tpu_custom_call.1} parent=27 // pred_check_branch
          %248 = sbr.rel (%p246) target = $region36
        $region35: #{tpu_custom_call.1} parent=27 // pred_region
          %249 = dma.done %s242, 768
        $region36: #{tpu_custom_call.1} parent=27 // pred_fallthru
          _
        %s250 = sand.u32 %s35, 1
        %s251 = scalar_lea.sflag [#allocation5], %s250
        %s252 = sand.u32 %s35, 1
        %s253 = smul.addr %s252, 96
        %s254 = scalar_lea.vmem [#allocation4], %s253
        %p255 = pneg %p48
        %p256 = pneg %p45
        %s257 = sand.u32 %s61, 1
        %s258 = scalar_lea.sflag [#allocation8], %s257
        %s259 = sand.u32 %s61, 1
        %s260 = smul.addr %s259, 48
        %s261 = scalar_lea.vmem [#allocation7], %s260
        %p262 = pneg %p74
        %p263 = pneg %p71
        %p264 = pneg %p100
        %p265 = pneg %p97
        %s266 = sand.u32 %s87, 1
        %s267 = scalar_lea.sflag [#allocation6], %s266
        %s268 = sand.u32 %s87, 1
        %s269 = smul.addr %s268, 96
        %s270 = scalar_lea.vmem [#allocation9], %s269
        %s271 = smul.u32 3, %s27
        %s272 = ssub.s32 5, %s271
        %p273 = scmp.lt.s32.totalorder %s272, 3
        %s274 = scalar_select %p273, %s272, 3
        %s275 = smul.u32 512, %s274
        %s276 = smul.u32 3, %s27
        %s277 = ssub.s32 5, %s276
        %p278 = scmp.lt.s32.totalorder %s277, 3
        %s279 = scalar_select %p278, %s277, 3
        %s280 = smul.u32 256, %s279
        %s281 = smul.u32 3, %s27
        %s282 = ssub.s32 5, %s281
        %p283 = scmp.lt.s32.totalorder %s282, 3
        %s284 = scalar_select %p283, %s282, 3
        %s285 = smul.u32 512, %s284
        %s286 = sld [smem:[#allocation3]]
        %s287 = sld [smem:[#allocation3 + $0x1]]
        %s288 = scalar_lea.vmem %s236, 48 [#allocation4]
        %v289 = vld [vmem:[%s288] sm:$0xff]
        %v290 = vld [vmem:[%s288 + $0x8] sm:$0xff]
        %v291 = vld [vmem:[%s288 + $0x10] sm:$0xff]
        %s292 = scalar_lea.vmem %s236, 72 [#allocation4]
        %v293 = vld [vmem:[%s292] sm:$0xff]
        %v294 = vld [vmem:[%s292 + $0x8] sm:$0xff]
        %v295 = vld [vmem:[%s292 + $0x10] sm:$0xff]
        %v296 = vld [vmem:[%s245] sm:$0xff]
        %v297 = vld [vmem:[%s245 + $0x8] sm:$0xff]
        %v298 = vld [vmem:[%s245 + $0x10] sm:$0xff]
        %s299 = scalar_lea.vmem %s245, 24 [#allocation7]
        %v300 = vld [vmem:[%s299] sm:$0xff]
        %v301 = vld [vmem:[%s299 + $0x8] sm:$0xff]
        %v302 = vld [vmem:[%s299 + $0x10] sm:$0xff]
        %v303 = vstv %s286
        %v304 = vadd.f32 %v293, %v303
        %v305 = vadd.f32 %v294, %v303
        %v306 = vadd.f32 %v295, %v303
        %v307 = vand.u32 2147483647, %v289
        %vm308 = vcmp.le.f32.partialorder %v307, 0.7853982
        %vm309 = vcmp.lt.s32.totalorder %v289, 0
        %v310 = vand.u32 %v289, 2139095040
        %v311 = vshrl.u32 %v310, 23
        %v312 = vsub.s32 %v311, 127
        %v313 = vand.u32 2147483647, %v289
        %v314 = vand.u32 %v313, 8388607
        %v315 = vor.u32 %v314, 8388608
        %v316 = vsub.s32 0, %v315
        %v317 = vadd.s32 %v312, 1
        %vm318 = vcmp.gt.s32.totalorder %v317, 0
        %v319 = vsel %vm318, %v317, 0
        %v320 = vshrl.u32 %v319, 5
        %v321 = vand.u32 %v319, 31
        %v322 = vsub.s32 32, %v321
        %v323 = vshrl.u32 683565275, %v322
        %v324 = vshll.u32 683565275, %v321
        %v325 = vshrl.u32 2475754826, %v322
        %v326 = vor.u32 %v324, %v325
        %v327 = vshll.u32 2475754826, %v321
        %v328 = vshrl.u32 2131351028, %v322
        %v329 = vor.u32 %v327, %v328
        %v330 = vshll.u32 2131351028, %v321
        %v331 = vshrl.u32 2102212464, %v322
        %v332 = vor.u32 %v330, %v331
        %v333 = vshll.u32 2102212464, %v321
        %v334 = vshrl.u32 920167782, %v322
        %v335 = vor.u32 %v333, %v334
        %v336 = vshll.u32 920167782, %v321
        %v337 = vshrl.u32 1326507024, %v322
        %v338 = vor.u32 %v336, %v337
        %vm339 = vcmp.lt.s32.totalorder %v320, 1
        %vm340 = vcmp.lt.s32.totalorder %v320, 2
        %vm341 = vcmp.lt.s32.totalorder %v320, 3
        %vm342 = vcmp.lt.s32.totalorder %v320, 4
        %v343 = vsel %vm339, %v323, %v326
        %v344 = vsel %vm342, %v332, 2102212464
        %v345 = vsel %vm341, %v329, %v344
        %v346 = vsel %vm340, %v343, %v345
        %v347 = vsel %vm339, %v326, %v329
        %v348 = vsel %vm342, %v335, 920167782
        %v349 = vsel %vm341, %v332, %v348
        %v350 = vsel %vm340, %v347, %v349
        %v351 = vsel %vm339, %v329, %v332
        %v352 = vsel %vm342, %v338, 1326507024
        %v353 = vsel %vm341, %v335, %v352
        %v354 = vsel %vm340, %v351, %v353
        %v355 = vshll.u32 %v315, 8
        %v356 = vmul.u32.u64.compose %v355, %v354
        %v357 = vextract.low.u32 %v356
        %v358 = vextract.high.u32 %v356
        %v359 = vmul.u32.u64.compose %v355, %v350
        %v360 = vextract.low.u32 %v359
        %v361 = vextract.high.u32 %v359
        %v362 = vmul.u32 %v355, %v346
        %v363 = vadd.s32 %v358, %v360
        %vm364 = vc.u32 %v358, %v360
        %v365 = vadd.s32 %v361, 1
        %v366 = vsel %vm364, %v365, %v361
        %v367 = vadd.s32 %v362, %v366
        %v368 = vadd.s32 %v367, 536870912
        %v369 = vshrl.u32 %v368, 30
        %v370 = vshll.u32 %v369, 30
        %v371 = vsub.s32 %v367, %v370
        %vm372 = vcmp.lt.s32.totalorder %v371, 0
        %v373 = vsub.s32 0, %v371
        %v374 = vsel %vm372, %v373, %v371
        %v375 = vclz %v374
        %v376 = vsub.s32 %v375, 2
        %vm377 = vcmp.gt.s32.totalorder 0, %v376
        %v378 = vsel %vm377, 0, %v376
        %v379 = vsub.s32 32, %v378
        %v380 = vshll.u32 %v371, %v378
        %v381 = vshrl.u32 %v363, %v379
        %v382 = vor.u32 %v380, %v381
        %v383 = vsub.s32 4294967266, %v378
        %v384 = vadd.s32 %v383, 127
        %v385 = vshll.u32 %v384, 23
        %v386 = vor.u32 4788187, %v385
        %v387 = vand.u32 2147483647, %v386
        %v389 = vcvt.s32.f32 %v382
        %v390 = vmul.f32 %v389, %v387
        %v391 = vxor.u32 %v390, 2147483648
        %v392 = vsel %vm309, %v391, %v390
        %v393 = vsub.s32 4, %v369
        %v394 = vsel %vm309, %v393, %v369
        %v395 = vsel %vm308, %v289, %v392
        %v396 = vsel %vm308, 0, %v394
        %v397 = vcosq.f32.pop %v395
        %v398 = vsinq.f32.pop %v395
        %vm399 = vweird.f32 %v289
        %v400 = vand.u32 %v396, 3
        %vm401 = vcmp.lt.s32.totalorder %v400, 2
        %vm402 = vcmp.eq.s32.totalorder %v400, 0
        %v403 = vxor.u32 %v398, 2147483648
        %v404 = vsel %vm402, %v397, %v403
        %vm405 = vcmp.eq.s32.totalorder %v400, 2
        %v406 = vxor.u32 %v397, 2147483648
        %v407 = vsel %vm405, %v406, %v398
        %v408 = vsel %vm401, %v404, %v407
        %v409 = vsel %vm399, nan, %v408
        %v410 = vand.u32 2147483647, %v290
        %vm411 = vcmp.le.f32.partialorder %v410, 0.7853982
        %vm412 = vcmp.lt.s32.totalorder %v290, 0
        %v413 = vand.u32 %v290, 2139095040
        %v414 = vshrl.u32 %v413, 23
        %v415 = vsub.s32 %v414, 127
        %v416 = vand.u32 2147483647, %v290
        %v417 = vand.u32 %v416, 8388607
        %v418 = vor.u32 %v417, 8388608
        %v419 = vsub.s32 0, %v418
        %v420 = vadd.s32 %v415, 1
        %vm421 = vcmp.gt.s32.totalorder %v420, 0
        %v422 = vsel %vm421, %v420, 0
        %v423 = vshrl.u32 %v422, 5
        %v424 = vand.u32 %v422, 31
        %v425 = vsub.s32 32, %v424
        %v426 = vshrl.u32 683565275, %v425
        %v427 = vshll.u32 683565275, %v424
        %v428 = vshrl.u32 2475754826, %v425
        %v429 = vor.u32 %v427, %v428
        %v430 = vshll.u32 2475754826, %v424
        %v431 = vshrl.u32 2131351028, %v425
        %v432 = vor.u32 %v430, %v431
        %v433 = vshll.u32 2131351028, %v424
        %v434 = vshrl.u32 2102212464, %v425
        %v435 = vor.u32 %v433, %v434
        %v436 = vshll.u32 2102212464, %v424
        %v437 = vshrl.u32 920167782, %v425
        %v438 = vor.u32 %v436, %v437
        %v439 = vshll.u32 920167782, %v424
        %v440 = vshrl.u32 1326507024, %v425
        %v441 = vor.u32 %v439, %v440
        %vm442 = vcmp.lt.s32.totalorder %v423, 1
        %vm443 = vcmp.lt.s32.totalorder %v423, 2
        %vm444 = vcmp.lt.s32.totalorder %v423, 3
        %vm445 = vcmp.lt.s32.totalorder %v423, 4
        %v446 = vsel %vm442, %v426, %v429
        %v447 = vsel %vm445, %v435, 2102212464
        %v448 = vsel %vm444, %v432, %v447
        %v449 = vsel %vm443, %v446, %v448
        %v450 = vsel %vm442, %v429, %v432
        %v451 = vsel %vm445, %v438, 920167782
        %v452 = vsel %vm444, %v435, %v451
        %v453 = vsel %vm443, %v450, %v452
        %v454 = vsel %vm442, %v432, %v435
        %v455 = vsel %vm445, %v441, 1326507024
        %v456 = vsel %vm444, %v438, %v455
        %v457 = vsel %vm443, %v454, %v456
        %v458 = vshll.u32 %v418, 8
        %v459 = vmul.u32.u64.compose %v458, %v457
        %v460 = vextract.low.u32 %v459
        %v461 = vextract.high.u32 %v459
        %v462 = vmul.u32.u64.compose %v458, %v453
        %v463 = vextract.low.u32 %v462
        %v464 = vextract.high.u32 %v462
        %v465 = vmul.u32 %v458, %v449
        %v466 = vadd.s32 %v461, %v463
        %vm467 = vc.u32 %v461, %v463
        %v468 = vadd.s32 %v464, 1
        %v469 = vsel %vm467, %v468, %v464
        %v470 = vadd.s32 %v465, %v469
        %v471 = vadd.s32 %v470, 536870912
        %v472 = vshrl.u32 %v471, 30
        %v473 = vshll.u32 %v472, 30
        %v474 = vsub.s32 %v470, %v473
        %vm475 = vcmp.lt.s32.totalorder %v474, 0
        %v476 = vsub.s32 0, %v474
        %v477 = vsel %vm475, %v476, %v474
        %v478 = vclz %v477
        %v479 = vsub.s32 %v478, 2
        %vm480 = vcmp.gt.s32.totalorder 0, %v479
        %v481 = vsel %vm480, 0, %v479
        %v482 = vsub.s32 32, %v481
        %v483 = vshll.u32 %v474, %v481
        %v484 = vshrl.u32 %v466, %v482
        %v485 = vor.u32 %v483, %v484
        %v486 = vsub.s32 4294967266, %v481
        %v487 = vadd.s32 %v486, 127
        %v488 = vshll.u32 %v487, 23
        %v489 = vor.u32 4788187, %v488
        %v490 = vand.u32 2147483647, %v489
        %v492 = vcvt.s32.f32 %v485
        %v493 = vmul.f32 %v492, %v490
        %v494 = vxor.u32 %v493, 2147483648
        %v495 = vsel %vm412, %v494, %v493
        %v496 = vsub.s32 4, %v472
        %v497 = vsel %vm412, %v496, %v472
        %v498 = vsel %vm411, %v290, %v495
        %v499 = vsel %vm411, 0, %v497
        %v500 = vcosq.f32.pop %v498
        %v501 = vsinq.f32.pop %v498
        %vm502 = vweird.f32 %v290
        %v503 = vand.u32 %v499, 3
        %vm504 = vcmp.lt.s32.totalorder %v503, 2
        %vm505 = vcmp.eq.s32.totalorder %v503, 0
        %v506 = vxor.u32 %v501, 2147483648
        %v507 = vsel %vm505, %v500, %v506
        %vm508 = vcmp.eq.s32.totalorder %v503, 2
        %v509 = vxor.u32 %v500, 2147483648
        %v510 = vsel %vm508, %v509, %v501
        %v511 = vsel %vm504, %v507, %v510
        %v512 = vsel %vm502, nan, %v511
        %v513 = vand.u32 2147483647, %v291
        %vm514 = vcmp.le.f32.partialorder %v513, 0.7853982
        %vm515 = vcmp.lt.s32.totalorder %v291, 0
        %v516 = vand.u32 %v291, 2139095040
        %v517 = vshrl.u32 %v516, 23
        %v518 = vsub.s32 %v517, 127
        %v519 = vand.u32 2147483647, %v291
        %v520 = vand.u32 %v519, 8388607
        %v521 = vor.u32 %v520, 8388608
        %v522 = vsub.s32 0, %v521
        %v523 = vadd.s32 %v518, 1
        %vm524 = vcmp.gt.s32.totalorder %v523, 0
        %v525 = vsel %vm524, %v523, 0
        %v526 = vshrl.u32 %v525, 5
        %v527 = vand.u32 %v525, 31
        %v528 = vsub.s32 32, %v527
        %v529 = vshrl.u32 683565275, %v528
        %v530 = vshll.u32 683565275, %v527
        %v531 = vshrl.u32 2475754826, %v528
        %v532 = vor.u32 %v530, %v531
        %v533 = vshll.u32 2475754826, %v527
        %v534 = vshrl.u32 2131351028, %v528
        %v535 = vor.u32 %v533, %v534
        %v536 = vshll.u32 2131351028, %v527
        %v537 = vshrl.u32 2102212464, %v528
        %v538 = vor.u32 %v536, %v537
        %v539 = vshll.u32 2102212464, %v527
        %v540 = vshrl.u32 920167782, %v528
        %v541 = vor.u32 %v539, %v540
        %v542 = vshll.u32 920167782, %v527
        %v543 = vshrl.u32 1326507024, %v528
        %v544 = vor.u32 %v542, %v543
        %vm545 = vcmp.lt.s32.totalorder %v526, 1
        %vm546 = vcmp.lt.s32.totalorder %v526, 2
        %vm547 = vcmp.lt.s32.totalorder %v526, 3
        %vm548 = vcmp.lt.s32.totalorder %v526, 4
        %v549 = vsel %vm545, %v529, %v532
        %v550 = vsel %vm548, %v538, 2102212464
        %v551 = vsel %vm547, %v535, %v550
        %v552 = vsel %vm546, %v549, %v551
        %v553 = vsel %vm545, %v532, %v535
        %v554 = vsel %vm548, %v541, 920167782
        %v555 = vsel %vm547, %v538, %v554
        %v556 = vsel %vm546, %v553, %v555
        %v557 = vsel %vm545, %v535, %v538
        %v558 = vsel %vm548, %v544, 1326507024
        %v559 = vsel %vm547, %v541, %v558
        %v560 = vsel %vm546, %v557, %v559
        %v561 = vshll.u32 %v521, 8
        %v562 = vmul.u32.u64.compose %v561, %v560
        %v563 = vextract.low.u32 %v562
        %v564 = vextract.high.u32 %v562
        %v565 = vmul.u32.u64.compose %v561, %v556
        %v566 = vextract.low.u32 %v565
        %v567 = vextract.high.u32 %v565
        %v568 = vmul.u32 %v561, %v552
        %v569 = vadd.s32 %v564, %v566
        %vm570 = vc.u32 %v564, %v566
        %v571 = vadd.s32 %v567, 1
        %v572 = vsel %vm570, %v571, %v567
        %v573 = vadd.s32 %v568, %v572
        %v574 = vadd.s32 %v573, 536870912
        %v575 = vshrl.u32 %v574, 30
        %v576 = vshll.u32 %v575, 30
        %v577 = vsub.s32 %v573, %v576
        %vm578 = vcmp.lt.s32.totalorder %v577, 0
        %v579 = vsub.s32 0, %v577
        %v580 = vsel %vm578, %v579, %v577
        %v581 = vclz %v580
        %v582 = vsub.s32 %v581, 2
        %vm583 = vcmp.gt.s32.totalorder 0, %v582
        %v584 = vsel %vm583, 0, %v582
        %v585 = vsub.s32 32, %v584
        %v586 = vshll.u32 %v577, %v584
        %v587 = vshrl.u32 %v569, %v585
        %v588 = vor.u32 %v586, %v587
        %v589 = vsub.s32 4294967266, %v584
        %v590 = vadd.s32 %v589, 127
        %v591 = vshll.u32 %v590, 23
        %v592 = vor.u32 4788187, %v591
        %v593 = vand.u32 2147483647, %v592
        %v595 = vcvt.s32.f32 %v588
        %v596 = vmul.f32 %v595, %v593
        %v597 = vxor.u32 %v596, 2147483648
        %v598 = vsel %vm515, %v597, %v596
        %v599 = vsub.s32 4, %v575
        %v600 = vsel %vm515, %v599, %v575
        %v601 = vsel %vm514, %v291, %v598
        %v602 = vsel %vm514, 0, %v600
        %v603 = vcosq.f32.pop %v601
        %v604 = vsinq.f32.pop %v601
        %vm605 = vweird.f32 %v291
        %v606 = vand.u32 %v602, 3
        %vm607 = vcmp.lt.s32.totalorder %v606, 2
        %vm608 = vcmp.eq.s32.totalorder %v606, 0
        %v609 = vxor.u32 %v604, 2147483648
        %v610 = vsel %vm608, %v603, %v609
        %vm611 = vcmp.eq.s32.totalorder %v606, 2
        %v612 = vxor.u32 %v603, 2147483648
        %v613 = vsel %vm611, %v612, %v604
        %v614 = vsel %vm607, %v610, %v613
        %v615 = vsel %vm605, nan, %v614
        %v616 = vmul.f32 %v304, %v409
        %v617 = vmul.f32 %v305, %v512
        %v618 = vmul.f32 %v306, %v615
        %619 = vst [vmem:[%s270] sm:$0xff] %v616
        %620 = vst [vmem:[%s270 + $0x8] sm:$0xff] %v617
        %621 = vst [vmem:[%s270 + $0x10] sm:$0xff] %v618
        %v622 = vand.u32 2147483647, %v289
        %vm623 = vcmp.le.f32.partialorder %v622, 0.7853982
        %vm624 = vcmp.lt.s32.totalorder %v289, 0
        %v625 = vand.u32 %v289, 2139095040
        %v626 = vshrl.u32 %v625, 23
        %v627 = vsub.s32 %v626, 127
        %v628 = vand.u32 2147483647, %v289
        %v629 = vand.u32 %v628, 8388607
        %v630 = vor.u32 %v629, 8388608
        %v631 = vsub.s32 0, %v630
        %v632 = vadd.s32 %v627, 1
        %vm633 = vcmp.gt.s32.totalorder %v632, 0
        %v634 = vsel %vm633, %v632, 0
        %v635 = vshrl.u32 %v634, 5
        %v636 = vand.u32 %v634, 31
        %v637 = vsub.s32 32, %v636
        %v638 = vshrl.u32 683565275, %v637
        %v639 = vshll.u32 683565275, %v636
        %v640 = vshrl.u32 2475754826, %v637
        %v641 = vor.u32 %v639, %v640
        %v642 = vshll.u32 2475754826, %v636
        %v643 = vshrl.u32 2131351028, %v637
        %v644 = vor.u32 %v642, %v643
        %v645 = vshll.u32 2131351028, %v636
        %v646 = vshrl.u32 2102212464, %v637
        %v647 = vor.u32 %v645, %v646
        %v648 = vshll.u32 2102212464, %v636
        %v649 = vshrl.u32 920167782, %v637
        %v650 = vor.u32 %v648, %v649
        %v651 = vshll.u32 920167782, %v636
        %v652 = vshrl.u32 1326507024, %v637
        %v653 = vor.u32 %v651, %v652
        %vm654 = vcmp.lt.s32.totalorder %v635, 1
        %vm655 = vcmp.lt.s32.totalorder %v635, 2
        %vm656 = vcmp.lt.s32.totalorder %v635, 3
        %vm657 = vcmp.lt.s32.totalorder %v635, 4
        %v658 = vsel %vm654, %v638, %v641
        %v659 = vsel %vm657, %v647, 2102212464
        %v660 = vsel %vm656, %v644, %v659
        %v661 = vsel %vm655, %v658, %v660
        %v662 = vsel %vm654, %v641, %v644
        %v663 = vsel %vm657, %v650, 920167782
        %v664 = vsel %vm656, %v647, %v663
        %v665 = vsel %vm655, %v662, %v664
        %v666 = vsel %vm654, %v644, %v647
        %v667 = vsel %vm657, %v653, 1326507024
        %v668 = vsel %vm656, %v650, %v667
        %v669 = vsel %vm655, %v666, %v668
        %v670 = vshll.u32 %v630, 8
        %v671 = vmul.u32.u64.compose %v670, %v669
        %v672 = vextract.low.u32 %v671
        %v673 = vextract.high.u32 %v671
        %v674 = vmul.u32.u64.compose %v670, %v665
        %v675 = vextract.low.u32 %v674
        %v676 = vextract.high.u32 %v674
        %v677 = vmul.u32 %v670, %v661
        %v678 = vadd.s32 %v673, %v675
        %vm679 = vc.u32 %v673, %v675
        %v680 = vadd.s32 %v676, 1
        %v681 = vsel %vm679, %v680, %v676
        %v682 = vadd.s32 %v677, %v681
        %v683 = vadd.s32 %v682, 536870912
        %v684 = vshrl.u32 %v683, 30
        %v685 = vshll.u32 %v684, 30
        %v686 = vsub.s32 %v682, %v685
        %vm687 = vcmp.lt.s32.totalorder %v686, 0
        %v688 = vsub.s32 0, %v686
        %v689 = vsel %vm687, %v688, %v686
        %v690 = vclz %v689
        %v691 = vsub.s32 %v690, 2
        %vm692 = vcmp.gt.s32.totalorder 0, %v691
        %v693 = vsel %vm692, 0, %v691
        %v694 = vsub.s32 32, %v693
        %v695 = vshll.u32 %v686, %v693
        %v696 = vshrl.u32 %v678, %v694
        %v697 = vor.u32 %v695, %v696
        %v698 = vsub.s32 4294967266, %v693
        %v699 = vadd.s32 %v698, 127
        %v700 = vshll.u32 %v699, 23
        %v701 = vor.u32 4788187, %v700
        %v702 = vand.u32 2147483647, %v701
        %v704 = vcvt.s32.f32 %v697
        %v705 = vmul.f32 %v704, %v702
        %v706 = vxor.u32 %v705, 2147483648
        %v707 = vsel %vm624, %v706, %v705
        %v708 = vsub.s32 4, %v684
        %v709 = vsel %vm624, %v708, %v684
        %v710 = vsel %vm623, %v289, %v707
        %v711 = vsel %vm623, 0, %v709
        %v712 = vcosq.f32.pop %v710
        %v713 = vsinq.f32.pop %v710
        %vm714 = vweird.f32 %v289
        %v715 = vadd.s32 %v711, 3
        %v716 = vand.u32 %v715, 3
        %vm717 = vcmp.lt.s32.totalorder %v716, 2
        %vm718 = vcmp.eq.s32.totalorder %v716, 0
        %v719 = vxor.u32 %v713, 2147483648
        %v720 = vsel %vm718, %v712, %v719
        %vm721 = vcmp.eq.s32.totalorder %v716, 2
        %v722 = vxor.u32 %v712, 2147483648
        %v723 = vsel %vm721, %v722, %v713
        %v724 = vsel %vm717, %v720, %v723
        %v725 = vsel %vm714, nan, %v724
        %v726 = vand.u32 2147483647, %v290
        %vm727 = vcmp.le.f32.partialorder %v726, 0.7853982
        %vm728 = vcmp.lt.s32.totalorder %v290, 0
        %v729 = vand.u32 %v290, 2139095040
        %v730 = vshrl.u32 %v729, 23
        %v731 = vsub.s32 %v730, 127
        %v732 = vand.u32 2147483647, %v290
        %v733 = vand.u32 %v732, 8388607
        %v734 = vor.u32 %v733, 8388608
        %v735 = vsub.s32 0, %v734
        %v736 = vadd.s32 %v731, 1
        %vm737 = vcmp.gt.s32.totalorder %v736, 0
        %v738 = vsel %vm737, %v736, 0
        %v739 = vshrl.u32 %v738, 5
        %v740 = vand.u32 %v738, 31
        %v741 = vsub.s32 32, %v740
        %v742 = vshrl.u32 683565275, %v741
        %v743 = vshll.u32 683565275, %v740
        %v744 = vshrl.u32 2475754826, %v741
        %v745 = vor.u32 %v743, %v744
        %v746 = vshll.u32 2475754826, %v740
        %v747 = vshrl.u32 2131351028, %v741
        %v748 = vor.u32 %v746, %v747
        %v749 = vshll.u32 2131351028, %v740
        %v750 = vshrl.u32 2102212464, %v741
        %v751 = vor.u32 %v749, %v750
        %v752 = vshll.u32 2102212464, %v740
        %v753 = vshrl.u32 920167782, %v741
        %v754 = vor.u32 %v752, %v753
        %v755 = vshll.u32 920167782, %v740
        %v756 = vshrl.u32 1326507024, %v741
        %v757 = vor.u32 %v755, %v756
        %vm758 = vcmp.lt.s32.totalorder %v739, 1
        %vm759 = vcmp.lt.s32.totalorder %v739, 2
        %vm760 = vcmp.lt.s32.totalorder %v739, 3
        %vm761 = vcmp.lt.s32.totalorder %v739, 4
        %v762 = vsel %vm758, %v742, %v745
        %v763 = vsel %vm761, %v751, 2102212464
        %v764 = vsel %vm760, %v748, %v763
        %v765 = vsel %vm759, %v762, %v764
        %v766 = vsel %vm758, %v745, %v748
        %v767 = vsel %vm761, %v754, 920167782
        %v768 = vsel %vm760, %v751, %v767
        %v769 = vsel %vm759, %v766, %v768
        %v770 = vsel %vm758, %v748, %v751
        %v771 = vsel %vm761, %v757, 1326507024
        %v772 = vsel %vm760, %v754, %v771
        %v773 = vsel %vm759, %v770, %v772
        %v774 = vshll.u32 %v734, 8
        %v775 = vmul.u32.u64.compose %v774, %v773
        %v776 = vextract.low.u32 %v775
        %v777 = vextract.high.u32 %v775
        %v778 = vmul.u32.u64.compose %v774, %v769
        %v779 = vextract.low.u32 %v778
        %v780 = vextract.high.u32 %v778
        %v781 = vmul.u32 %v774, %v765
        %v782 = vadd.s32 %v777, %v779
        %vm783 = vc.u32 %v777, %v779
        %v784 = vadd.s32 %v780, 1
        %v785 = vsel %vm783, %v784, %v780
        %v786 = vadd.s32 %v781, %v785
        %v787 = vadd.s32 %v786, 536870912
        %v788 = vshrl.u32 %v787, 30
        %v789 = vshll.u32 %v788, 30
        %v790 = vsub.s32 %v786, %v789
        %vm791 = vcmp.lt.s32.totalorder %v790, 0
        %v792 = vsub.s32 0, %v790
        %v793 = vsel %vm791, %v792, %v790
        %v794 = vclz %v793
        %v795 = vsub.s32 %v794, 2
        %vm796 = vcmp.gt.s32.totalorder 0, %v795
        %v797 = vsel %vm796, 0, %v795
        %v798 = vsub.s32 32, %v797
        %v799 = vshll.u32 %v790, %v797
        %v800 = vshrl.u32 %v782, %v798
        %v801 = vor.u32 %v799, %v800
        %v802 = vsub.s32 4294967266, %v797
        %v803 = vadd.s32 %v802, 127
        %v804 = vshll.u32 %v803, 23
        %v805 = vor.u32 4788187, %v804
        %v806 = vand.u32 2147483647, %v805
        %v808 = vcvt.s32.f32 %v801
        %v809 = vmul.f32 %v808, %v806
        %v810 = vxor.u32 %v809, 2147483648
        %v811 = vsel %vm728, %v810, %v809
        %v812 = vsub.s32 4, %v788
        %v813 = vsel %vm728, %v812, %v788
        %v814 = vsel %vm727, %v290, %v811
        %v815 = vsel %vm727, 0, %v813
        %v816 = vcosq.f32.pop %v814
        %v817 = vsinq.f32.pop %v814
        %vm818 = vweird.f32 %v290
        %v819 = vadd.s32 %v815, 3
        %v820 = vand.u32 %v819, 3
        %vm821 = vcmp.lt.s32.totalorder %v820, 2
        %vm822 = vcmp.eq.s32.totalorder %v820, 0
        %v823 = vxor.u32 %v817, 2147483648
        %v824 = vsel %vm822, %v816, %v823
        %vm825 = vcmp.eq.s32.totalorder %v820, 2
        %v826 = vxor.u32 %v816, 2147483648
        %v827 = vsel %vm825, %v826, %v817
        %v828 = vsel %vm821, %v824, %v827
        %v829 = vsel %vm818, nan, %v828
        %v830 = vand.u32 2147483647, %v291
        %vm831 = vcmp.le.f32.partialorder %v830, 0.7853982
        %vm832 = vcmp.lt.s32.totalorder %v291, 0
        %v833 = vand.u32 %v291, 2139095040
        %v834 = vshrl.u32 %v833, 23
        %v835 = vsub.s32 %v834, 127
        %v836 = vand.u32 2147483647, %v291
        %v837 = vand.u32 %v836, 8388607
        %v838 = vor.u32 %v837, 8388608
        %v839 = vsub.s32 0, %v838
        %v840 = vadd.s32 %v835, 1
        %vm841 = vcmp.gt.s32.totalorder %v840, 0
        %v842 = vsel %vm841, %v840, 0
        %v843 = vshrl.u32 %v842, 5
        %v844 = vand.u32 %v842, 31
        %v845 = vsub.s32 32, %v844
        %v846 = vshrl.u32 683565275, %v845
        %v847 = vshll.u32 683565275, %v844
        %v848 = vshrl.u32 2475754826, %v845
        %v849 = vor.u32 %v847, %v848
        %v850 = vshll.u32 2475754826, %v844
        %v851 = vshrl.u32 2131351028, %v845
        %v852 = vor.u32 %v850, %v851
        %v853 = vshll.u32 2131351028, %v844
        %v854 = vshrl.u32 2102212464, %v845
        %v855 = vor.u32 %v853, %v854
        %v856 = vshll.u32 2102212464, %v844
        %v857 = vshrl.u32 920167782, %v845
        %v858 = vor.u32 %v856, %v857
        %v859 = vshll.u32 920167782, %v844
        %v860 = vshrl.u32 1326507024, %v845
        %v861 = vor.u32 %v859, %v860
        %vm862 = vcmp.lt.s32.totalorder %v843, 1
        %vm863 = vcmp.lt.s32.totalorder %v843, 2
        %vm864 = vcmp.lt.s32.totalorder %v843, 3
        %vm865 = vcmp.lt.s32.totalorder %v843, 4
        %v866 = vsel %vm862, %v846, %v849
        %v867 = vsel %vm865, %v855, 2102212464
        %v868 = vsel %vm864, %v852, %v867
        %v869 = vsel %vm863, %v866, %v868
        %v870 = vsel %vm862, %v849, %v852
        %v871 = vsel %vm865, %v858, 920167782
        %v872 = vsel %vm864, %v855, %v871
        %v873 = vsel %vm863, %v870, %v872
        %v874 = vsel %vm862, %v852, %v855
        %v875 = vsel %vm865, %v861, 1326507024
        %v876 = vsel %vm864, %v858, %v875
        %v877 = vsel %vm863, %v874, %v876
        %v878 = vshll.u32 %v838, 8
        %v879 = vmul.u32.u64.compose %v878, %v877
        %v880 = vextract.low.u32 %v879
        %v881 = vextract.high.u32 %v879
        %v882 = vmul.u32.u64.compose %v878, %v873
        %v883 = vextract.low.u32 %v882
        %v884 = vextract.high.u32 %v882
        %v885 = vmul.u32 %v878, %v869
        %v886 = vadd.s32 %v881, %v883
        %vm887 = vc.u32 %v881, %v883
        %v888 = vadd.s32 %v884, 1
        %v889 = vsel %vm887, %v888, %v884
        %v890 = vadd.s32 %v885, %v889
        %v891 = vadd.s32 %v890, 536870912
        %v892 = vshrl.u32 %v891, 30
        %v893 = vshll.u32 %v892, 30
        %v894 = vsub.s32 %v890, %v893
        %vm895 = vcmp.lt.s32.totalorder %v894, 0
        %v896 = vsub.s32 0, %v894
        %v897 = vsel %vm895, %v896, %v894
        %v898 = vclz %v897
        %v899 = vsub.s32 %v898, 2
        %vm900 = vcmp.gt.s32.totalorder 0, %v899
        %v901 = vsel %vm900, 0, %v899
        %v902 = vsub.s32 32, %v901
        %v903 = vshll.u32 %v894, %v901
        %v904 = vshrl.u32 %v886, %v902
        %v905 = vor.u32 %v903, %v904
        %v906 = vsub.s32 4294967266, %v901
        %v907 = vadd.s32 %v906, 127
        %v908 = vshll.u32 %v907, 23
        %v909 = vor.u32 4788187, %v908
        %v910 = vand.u32 2147483647, %v909
        %v912 = vcvt.s32.f32 %v905
        %v913 = vmul.f32 %v912, %v910
        %v914 = vxor.u32 %v913, 2147483648
        %v915 = vsel %vm832, %v914, %v913
        %v916 = vsub.s32 4, %v892
        %v917 = vsel %vm832, %v916, %v892
        %v918 = vsel %vm831, %v291, %v915
        %v919 = vsel %vm831, 0, %v917
        %v920 = vcosq.f32.pop %v918
        %v921 = vsinq.f32.pop %v918
        %vm922 = vweird.f32 %v291
        %v923 = vadd.s32 %v919, 3
        %v924 = vand.u32 %v923, 3
        %vm925 = vcmp.lt.s32.totalorder %v924, 2
        %vm926 = vcmp.eq.s32.totalorder %v924, 0
        %v927 = vxor.u32 %v921, 2147483648
        %v928 = vsel %vm926, %v920, %v927
        %vm929 = vcmp.eq.s32.totalorder %v924, 2
        %v930 = vxor.u32 %v920, 2147483648
        %v931 = vsel %vm929, %v930, %v921
        %v932 = vsel %vm925, %v928, %v931
        %v933 = vsel %vm922, nan, %v932
        %v934 = vmul.f32 %v304, %v725
        %v935 = vmul.f32 %v305, %v829
        %v936 = vmul.f32 %v306, %v933
        %s937 = scalar_lea.vmem %s270, 24 [#allocation9]
        %938 = vst [vmem:[%s937] sm:$0xff] %v934
        %939 = vst [vmem:[%s937 + $0x8] sm:$0xff] %v935
        %940 = vst [vmem:[%s937 + $0x10] sm:$0xff] %v936
        %v941 = vstv %s287
        %v942 = vmul.f32 %v293, %v941
        %v943 = vmul.f32 %v294, %v941
        %v944 = vmul.f32 %v295, %v941
        %v945 = vand.u32 2147483647, %v296
        %vm946 = vcmp.le.f32.partialorder %v945, 0.7853982
        %vm947 = vcmp.lt.s32.totalorder %v296, 0
        %v948 = vand.u32 %v296, 2139095040
        %v949 = vshrl.u32 %v948, 23
        %v950 = vsub.s32 %v949, 127
        %v951 = vand.u32 2147483647, %v296
        %v952 = vand.u32 %v951, 8388607
        %v953 = vor.u32 %v952, 8388608
        %v954 = vsub.s32 0, %v953
        %v955 = vadd.s32 %v950, 1
        %vm956 = vcmp.gt.s32.totalorder %v955, 0
        %v957 = vsel %vm956, %v955, 0
        %v958 = vshrl.u32 %v957, 5
        %v959 = vand.u32 %v957, 31
        %v960 = vsub.s32 32, %v959
        %v961 = vshrl.u32 683565275, %v960
        %v962 = vshll.u32 683565275, %v959
        %v963 = vshrl.u32 2475754826, %v960
        %v964 = vor.u32 %v962, %v963
        %v965 = vshll.u32 2475754826, %v959
        %v966 = vshrl.u32 2131351028, %v960
        %v967 = vor.u32 %v965, %v966
        %v968 = vshll.u32 2131351028, %v959
        %v969 = vshrl.u32 2102212464, %v960
        %v970 = vor.u32 %v968, %v969
        %v971 = vshll.u32 2102212464, %v959
        %v972 = vshrl.u32 920167782, %v960
        %v973 = vor.u32 %v971, %v972
        %v974 = vshll.u32 920167782, %v959
        %v975 = vshrl.u32 1326507024, %v960
        %v976 = vor.u32 %v974, %v975
        %vm977 = vcmp.lt.s32.totalorder %v958, 1
        %vm978 = vcmp.lt.s32.totalorder %v958, 2
        %vm979 = vcmp.lt.s32.totalorder %v958, 3
        %vm980 = vcmp.lt.s32.totalorder %v958, 4
        %v981 = vsel %vm977, %v961, %v964
        %v982 = vsel %vm980, %v970, 2102212464
        %v983 = vsel %vm979, %v967, %v982
        %v984 = vsel %vm978, %v981, %v983
        %v985 = vsel %vm977, %v964, %v967
        %v986 = vsel %vm980, %v973, 920167782
        %v987 = vsel %vm979, %v970, %v986
        %v988 = vsel %vm978, %v985, %v987
        %v989 = vsel %vm977, %v967, %v970
        %v990 = vsel %vm980, %v976, 1326507024
        %v991 = vsel %vm979, %v973, %v990
        %v992 = vsel %vm978, %v989, %v991
        %v993 = vshll.u32 %v953, 8
        %v994 = vmul.u32.u64.compose %v993, %v992
        %v995 = vextract.low.u32 %v994
        %v996 = vextract.high.u32 %v994
        %v997 = vmul.u32.u64.compose %v993, %v988
        %v998 = vextract.low.u32 %v997
        %v999 = vextract.high.u32 %v997
        %v1000 = vmul.u32 %v993, %v984
        %v1001 = vadd.s32 %v996, %v998
        %vm1002 = vc.u32 %v996, %v998
        %v1003 = vadd.s32 %v999, 1
        %v1004 = vsel %vm1002, %v1003, %v999
        %v1005 = vadd.s32 %v1000, %v1004
        %v1006 = vadd.s32 %v1005, 536870912
        %v1007 = vshrl.u32 %v1006, 30
        %v1008 = vshll.u32 %v1007, 30
        %v1009 = vsub.s32 %v1005, %v1008
        %vm1010 = vcmp.lt.s32.totalorder %v1009, 0
        %v1011 = vsub.s32 0, %v1009
        %v1012 = vsel %vm1010, %v1011, %v1009
        %v1013 = vclz %v1012
        %v1014 = vsub.s32 %v1013, 2
        %vm1015 = vcmp.gt.s32.totalorder 0, %v1014
        %v1016 = vsel %vm1015, 0, %v1014
        %v1017 = vsub.s32 32, %v1016
        %v1018 = vshll.u32 %v1009, %v1016
        %v1019 = vshrl.u32 %v1001, %v1017
        %v1020 = vor.u32 %v1018, %v1019
        %v1021 = vsub.s32 4294967266, %v1016
        %v1022 = vadd.s32 %v1021, 127
        %v1023 = vshll.u32 %v1022, 23
        %v1024 = vor.u32 4788187, %v1023
        %v1025 = vand.u32 2147483647, %v1024
        %v1027 = vcvt.s32.f32 %v1020
        %v1028 = vmul.f32 %v1027, %v1025
        %v1029 = vxor.u32 %v1028, 2147483648
        %v1030 = vsel %vm947, %v1029, %v1028
        %v1031 = vsub.s32 4, %v1007
        %v1032 = vsel %vm947, %v1031, %v1007
        %v1033 = vsel %vm946, %v296, %v1030
        %v1034 = vsel %vm946, 0, %v1032
        %v1035 = vcosq.f32.pop %v1033
        %v1036 = vsinq.f32.pop %v1033
        %vm1037 = vweird.f32 %v296
        %v1038 = vand.u32 %v1034, 3
        %v1039 = vadd.s32 %v1034, 3
        %v1040 = vand.u32 %v1039, 3
        %vm1041 = vcmp.lt.s32.totalorder %v1038, 2
        %vm1042 = vcmp.eq.s32.totalorder %v1038, 0
        %v1043 = vxor.u32 %v1036, 2147483648
        %v1044 = vsel %vm1042, %v1035, %v1043
        %vm1045 = vcmp.eq.s32.totalorder %v1038, 2
        %v1046 = vxor.u32 %v1035, 2147483648
        %v1047 = vsel %vm1045, %v1046, %v1036
        %v1048 = vsel %vm1041, %v1044, %v1047
        %vm1049 = vcmp.lt.s32.totalorder %v1040, 2
        %vm1050 = vcmp.eq.s32.totalorder %v1040, 0
        %v1051 = vxor.u32 %v1036, 2147483648
        %v1052 = vsel %vm1050, %v1035, %v1051
        %vm1053 = vcmp.eq.s32.totalorder %v1040, 2
        %v1054 = vxor.u32 %v1035, 2147483648
        %v1055 = vsel %vm1053, %v1054, %v1036
        %v1056 = vsel %vm1049, %v1052, %v1055
        %v1057 = vrcp.pop %v1048
        %v1058 = vmul.f32 %v1056, %v1057
        %v1059 = vsel %vm1037, nan, %v1058
        %v1060 = vand.u32 2147483647, %v297
        %vm1061 = vcmp.le.f32.partialorder %v1060, 0.7853982
        %vm1062 = vcmp.lt.s32.totalorder %v297, 0
        %v1063 = vand.u32 %v297, 2139095040
        %v1064 = vshrl.u32 %v1063, 23
        %v1065 = vsub.s32 %v1064, 127
        %v1066 = vand.u32 2147483647, %v297
        %v1067 = vand.u32 %v1066, 8388607
        %v1068 = vor.u32 %v1067, 8388608
        %v1069 = vsub.s32 0, %v1068
        %v1070 = vadd.s32 %v1065, 1
        %vm1071 = vcmp.gt.s32.totalorder %v1070, 0
        %v1072 = vsel %vm1071, %v1070, 0
        %v1073 = vshrl.u32 %v1072, 5
        %v1074 = vand.u32 %v1072, 31
        %v1075 = vsub.s32 32, %v1074
        %v1076 = vshrl.u32 683565275, %v1075
        %v1077 = vshll.u32 683565275, %v1074
        %v1078 = vshrl.u32 2475754826, %v1075
        %v1079 = vor.u32 %v1077, %v1078
        %v1080 = vshll.u32 2475754826, %v1074
        %v1081 = vshrl.u32 2131351028, %v1075
        %v1082 = vor.u32 %v1080, %v1081
        %v1083 = vshll.u32 2131351028, %v1074
        %v1084 = vshrl.u32 2102212464, %v1075
        %v1085 = vor.u32 %v1083, %v1084
        %v1086 = vshll.u32 2102212464, %v1074
        %v1087 = vshrl.u32 920167782, %v1075
        %v1088 = vor.u32 %v1086, %v1087
        %v1089 = vshll.u32 920167782, %v1074
        %v1090 = vshrl.u32 1326507024, %v1075
        %v1091 = vor.u32 %v1089, %v1090
        %vm1092 = vcmp.lt.s32.totalorder %v1073, 1
        %vm1093 = vcmp.lt.s32.totalorder %v1073, 2
        %vm1094 = vcmp.lt.s32.totalorder %v1073, 3
        %vm1095 = vcmp.lt.s32.totalorder %v1073, 4
        %v1096 = vsel %vm1092, %v1076, %v1079
        %v1097 = vsel %vm1095, %v1085, 2102212464
        %v1098 = vsel %vm1094, %v1082, %v1097
        %v1099 = vsel %vm1093, %v1096, %v1098
        %v1100 = vsel %vm1092, %v1079, %v1082
        %v1101 = vsel %vm1095, %v1088, 920167782
        %v1102 = vsel %vm1094, %v1085, %v1101
        %v1103 = vsel %vm1093, %v1100, %v1102
        %v1104 = vsel %vm1092, %v1082, %v1085
        %v1105 = vsel %vm1095, %v1091, 1326507024
        %v1106 = vsel %vm1094, %v1088, %v1105
        %v1107 = vsel %vm1093, %v1104, %v1106
        %v1108 = vshll.u32 %v1068, 8
        %v1109 = vmul.u32.u64.compose %v1108, %v1107
        %v1110 = vextract.low.u32 %v1109
        %v1111 = vextract.high.u32 %v1109
        %v1112 = vmul.u32.u64.compose %v1108, %v1103
        %v1113 = vextract.low.u32 %v1112
        %v1114 = vextract.high.u32 %v1112
        %v1115 = vmul.u32 %v1108, %v1099
        %v1116 = vadd.s32 %v1111, %v1113
        %vm1117 = vc.u32 %v1111, %v1113
        %v1118 = vadd.s32 %v1114, 1
        %v1119 = vsel %vm1117, %v1118, %v1114
        %v1120 = vadd.s32 %v1115, %v1119
        %v1121 = vadd.s32 %v1120, 536870912
        %v1122 = vshrl.u32 %v1121, 30
        %v1123 = vshll.u32 %v1122, 30
        %v1124 = vsub.s32 %v1120, %v1123
        %vm1125 = vcmp.lt.s32.totalorder %v1124, 0
        %v1126 = vsub.s32 0, %v1124
        %v1127 = vsel %vm1125, %v1126, %v1124
        %v1128 = vclz %v1127
        %v1129 = vsub.s32 %v1128, 2
        %vm1130 = vcmp.gt.s32.totalorder 0, %v1129
        %v1131 = vsel %vm1130, 0, %v1129
        %v1132 = vsub.s32 32, %v1131
        %v1133 = vshll.u32 %v1124, %v1131
        %v1134 = vshrl.u32 %v1116, %v1132
        %v1135 = vor.u32 %v1133, %v1134
        %v1136 = vsub.s32 4294967266, %v1131
        %v1137 = vadd.s32 %v1136, 127
        %v1138 = vshll.u32 %v1137, 23
        %v1139 = vor.u32 4788187, %v1138
        %v1140 = vand.u32 2147483647, %v1139
        %v1142 = vcvt.s32.f32 %v1135
        %v1143 = vmul.f32 %v1142, %v1140
        %v1144 = vxor.u32 %v1143, 2147483648
        %v1145 = vsel %vm1062, %v1144, %v1143
        %v1146 = vsub.s32 4, %v1122
        %v1147 = vsel %vm1062, %v1146, %v1122
        %v1148 = vsel %vm1061, %v297, %v1145
        %v1149 = vsel %vm1061, 0, %v1147
        %v1150 = vcosq.f32.pop %v1148
        %v1151 = vsinq.f32.pop %v1148
        %vm1152 = vweird.f32 %v297
        %v1153 = vand.u32 %v1149, 3
        %v1154 = vadd.s32 %v1149, 3
        %v1155 = vand.u32 %v1154, 3
        %vm1156 = vcmp.lt.s32.totalorder %v1153, 2
        %vm1157 = vcmp.eq.s32.totalorder %v1153, 0
        %v1158 = vxor.u32 %v1151, 2147483648
        %v1159 = vsel %vm1157, %v1150, %v1158
        %vm1160 = vcmp.eq.s32.totalorder %v1153, 2
        %v1161 = vxor.u32 %v1150, 2147483648
        %v1162 = vsel %vm1160, %v1161, %v1151
        %v1163 = vsel %vm1156, %v1159, %v1162
        %vm1164 = vcmp.lt.s32.totalorder %v1155, 2
        %vm1165 = vcmp.eq.s32.totalorder %v1155, 0
        %v1166 = vxor.u32 %v1151, 2147483648
        %v1167 = vsel %vm1165, %v1150, %v1166
        %vm1168 = vcmp.eq.s32.totalorder %v1155, 2
        %v1169 = vxor.u32 %v1150, 2147483648
        %v1170 = vsel %vm1168, %v1169, %v1151
        %v1171 = vsel %vm1164, %v1167, %v1170
        %v1172 = vrcp.pop %v1163
        %v1173 = vmul.f32 %v1171, %v1172
        %v1174 = vsel %vm1152, nan, %v1173
        %v1175 = vand.u32 2147483647, %v298
        %vm1176 = vcmp.le.f32.partialorder %v1175, 0.7853982
        %vm1177 = vcmp.lt.s32.totalorder %v298, 0
        %v1178 = vand.u32 %v298, 2139095040
        %v1179 = vshrl.u32 %v1178, 23
        %v1180 = vsub.s32 %v1179, 127
        %v1181 = vand.u32 2147483647, %v298
        %v1182 = vand.u32 %v1181, 8388607
        %v1183 = vor.u32 %v1182, 8388608
        %v1184 = vsub.s32 0, %v1183
        %v1185 = vadd.s32 %v1180, 1
        %vm1186 = vcmp.gt.s32.totalorder %v1185, 0
        %v1187 = vsel %vm1186, %v1185, 0
        %v1188 = vshrl.u32 %v1187, 5
        %v1189 = vand.u32 %v1187, 31
        %v1190 = vsub.s32 32, %v1189
        %v1191 = vshrl.u32 683565275, %v1190
        %v1192 = vshll.u32 683565275, %v1189
        %v1193 = vshrl.u32 2475754826, %v1190
        %v1194 = vor.u32 %v1192, %v1193
        %v1195 = vshll.u32 2475754826, %v1189
        %v1196 = vshrl.u32 2131351028, %v1190
        %v1197 = vor.u32 %v1195, %v1196
        %v1198 = vshll.u32 2131351028, %v1189
        %v1199 = vshrl.u32 2102212464, %v1190
        %v1200 = vor.u32 %v1198, %v1199
        %v1201 = vshll.u32 2102212464, %v1189
        %v1202 = vshrl.u32 920167782, %v1190
        %v1203 = vor.u32 %v1201, %v1202
        %v1204 = vshll.u32 920167782, %v1189
        %v1205 = vshrl.u32 1326507024, %v1190
        %v1206 = vor.u32 %v1204, %v1205
        %vm1207 = vcmp.lt.s32.totalorder %v1188, 1
        %vm1208 = vcmp.lt.s32.totalorder %v1188, 2
        %vm1209 = vcmp.lt.s32.totalorder %v1188, 3
        %vm1210 = vcmp.lt.s32.totalorder %v1188, 4
        %v1211 = vsel %vm1207, %v1191, %v1194
        %v1212 = vsel %vm1210, %v1200, 2102212464
        %v1213 = vsel %vm1209, %v1197, %v1212
        %v1214 = vsel %vm1208, %v1211, %v1213
        %v1215 = vsel %vm1207, %v1194, %v1197
        %v1216 = vsel %vm1210, %v1203, 920167782
        %v1217 = vsel %vm1209, %v1200, %v1216
        %v1218 = vsel %vm1208, %v1215, %v1217
        %v1219 = vsel %vm1207, %v1197, %v1200
        %v1220 = vsel %vm1210, %v1206, 1326507024
        %v1221 = vsel %vm1209, %v1203, %v1220
        %v1222 = vsel %vm1208, %v1219, %v1221
        %v1223 = vshll.u32 %v1183, 8
        %v1224 = vmul.u32.u64.compose %v1223, %v1222
        %v1225 = vextract.low.u32 %v1224
        %v1226 = vextract.high.u32 %v1224
        %v1227 = vmul.u32.u64.compose %v1223, %v1218
        %v1228 = vextract.low.u32 %v1227
        %v1229 = vextract.high.u32 %v1227
        %v1230 = vmul.u32 %v1223, %v1214
        %v1231 = vadd.s32 %v1226, %v1228
        %vm1232 = vc.u32 %v1226, %v1228
        %v1233 = vadd.s32 %v1229, 1
        %v1234 = vsel %vm1232, %v1233, %v1229
        %v1235 = vadd.s32 %v1230, %v1234
        %v1236 = vadd.s32 %v1235, 536870912
        %v1237 = vshrl.u32 %v1236, 30
        %v1238 = vshll.u32 %v1237, 30
        %v1239 = vsub.s32 %v1235, %v1238
        %vm1240 = vcmp.lt.s32.totalorder %v1239, 0
        %v1241 = vsub.s32 0, %v1239
        %v1242 = vsel %vm1240, %v1241, %v1239
        %v1243 = vclz %v1242
        %v1244 = vsub.s32 %v1243, 2
        %vm1245 = vcmp.gt.s32.totalorder 0, %v1244
        %v1246 = vsel %vm1245, 0, %v1244
        %v1247 = vsub.s32 32, %v1246
        %v1248 = vshll.u32 %v1239, %v1246
        %v1249 = vshrl.u32 %v1231, %v1247
        %v1250 = vor.u32 %v1248, %v1249
        %v1251 = vsub.s32 4294967266, %v1246
        %v1252 = vadd.s32 %v1251, 127
        %v1253 = vshll.u32 %v1252, 23
        %v1254 = vor.u32 4788187, %v1253
        %v1255 = vand.u32 2147483647, %v1254
        %v1257 = vcvt.s32.f32 %v1250
        %v1258 = vmul.f32 %v1257, %v1255
        %v1259 = vxor.u32 %v1258, 2147483648
        %v1260 = vsel %vm1177, %v1259, %v1258
        %v1261 = vsub.s32 4, %v1237
        %v1262 = vsel %vm1177, %v1261, %v1237
        %v1263 = vsel %vm1176, %v298, %v1260
        %v1264 = vsel %vm1176, 0, %v1262
        %v1265 = vcosq.f32.pop %v1263
        %v1266 = vsinq.f32.pop %v1263
        %vm1267 = vweird.f32 %v298
        %v1268 = vand.u32 %v1264, 3
        %v1269 = vadd.s32 %v1264, 3
        %v1270 = vand.u32 %v1269, 3
        %vm1271 = vcmp.lt.s32.totalorder %v1268, 2
        %vm1272 = vcmp.eq.s32.totalorder %v1268, 0
        %v1273 = vxor.u32 %v1266, 2147483648
        %v1274 = vsel %vm1272, %v1265, %v1273
        %vm1275 = vcmp.eq.s32.totalorder %v1268, 2
        %v1276 = vxor.u32 %v1265, 2147483648
        %v1277 = vsel %vm1275, %v1276, %v1266
        %v1278 = vsel %vm1271, %v1274, %v1277
        %vm1279 = vcmp.lt.s32.totalorder %v1270, 2
        %vm1280 = vcmp.eq.s32.totalorder %v1270, 0
        %v1281 = vxor.u32 %v1266, 2147483648
        %v1282 = vsel %vm1280, %v1265, %v1281
        %vm1283 = vcmp.eq.s32.totalorder %v1270, 2
        %v1284 = vxor.u32 %v1265, 2147483648
        %v1285 = vsel %vm1283, %v1284, %v1266
        %v1286 = vsel %vm1279, %v1282, %v1285
        %v1287 = vrcp.pop %v1278
        %v1288 = vmul.f32 %v1286, %v1287
        %v1289 = vsel %vm1267, nan, %v1288
        %v1290 = vmul.f32 %v942, %v1059
        %v1291 = vmul.f32 %v943, %v1174
        %v1292 = vmul.f32 %v944, %v1289
        %s1293 = scalar_lea.vmem %s270, 48 [#allocation9]
        %1294 = vst [vmem:[%s1293] sm:$0xff] %v1290
        %1295 = vst [vmem:[%s1293 + $0x8] sm:$0xff] %v1291
        %1296 = vst [vmem:[%s1293 + $0x10] sm:$0xff] %v1292
        %s1297 = scalar_lea.vmem %s270, 72 [#allocation9]
        %1298 = vst [vmem:[%s1297] sm:$0xff] %v300
        %1299 = vst [vmem:[%s1297 + $0x8] sm:$0xff] %v301
        %1300 = vst [vmem:[%s1297 + $0x10] sm:$0xff] %v302
        %s1301 = sand.u32 %s87, 1
        %s1302 = scalar_lea.sflag [#allocation6], %s1301
        %s1303 = sand.u32 %s87, 1
        %s1304 = smul.addr %s1303, 96
        %s1305 = scalar_lea.vmem [#allocation9], %s1304
        // Predicated region
        $region37: #{tpu_custom_call.1} parent=27 // pred_check
          %p1306 = pneg %p97
        $region38: #{tpu_custom_call.1} parent=27 // pred_check_branch
          %1308 = sbr.rel (%p1306) target = $region40
        $region39: #{tpu_custom_call.1} parent=27 // pred_region
          #allocation15 [shape = 'u32[6]{0}', space=smem, size = 0x18, scoped, tag = 'DMA stride descriptor']
          %s1309 = smul.u32 3, %s27
          %s1310 = ssub.s32 5, %s1309
          %p1311 = scmp.lt.s32.totalorder %s1310, 3
          %s1312 = scalar_select %p1311, %s1310, 3
          %s1313 = smul.u32 512, %s1312
          %s1315 = ssub.s32 1536, %s1313
          %1316 = vsyncadd %s1302, %s1315
          %p1317 = scmp.ne.s32.totalorder 0, %s1313
          %s1318 = smul.addr %s1309, 128
          %s1319 = scalar_lea.hbm %s3, %s1318
          %s1320 = smul.u32 8, %s1312
          %s1321 = smul.u32 %s1320, 4
          %s1323 = sshll.u32 1, 14
          %s1324 = sxor.u32 4294967295, %s1323
          %s1327 = sshll.u32 7, 18
          %s1328 = sxor.u32 4294967295, %s1327
          %s1329 = sand.u32 0, %s1328
          %s1331 = sor.u32 %s1329, 0
          %s1333 = sshll.u32 3, 24
          %s1334 = sxor.u32 4294967295, %s1333
          %s1335 = sand.u32 %s1331, %s1334
          %s1337 = sor.u32 %s1335, 0
          %s1338 = sshll.u32 %s1305, 4
          %s1339 = int_to_ptr.vmem [resolvable:$true] %s1338
          %s1340 = sshll.u32 %s1321, 4
          %1345 = sst [smem:[#allocation15]] 384
          %s1346 = scalar_lea.smem [#allocation15], 1
          %1347 = sst [smem:[%s1346]] 640
          %s1348 = scalar_lea.smem [#allocation15], 2
          %1349 = sst [smem:[%s1348]] %s1312
          %s1350 = scalar_lea.smem [#allocation15], 3
          %1351 = sst [smem:[%s1350]] 128
          %s1352 = scalar_lea.smem [#allocation15], 4
          %1353 = sst [smem:[%s1352]] 128
          %s1354 = scalar_lea.smem [#allocation15], 5
          %1355 = sst [smem:[%s1354]] 8
          %1357 = dma.general (%p1317), %s1339, %s1340, %s1319, %s1302, [#allocation14], [#allocation15], %s1337, 0
        $region40: #{tpu_custom_call.1} parent=27 // pred_fallthru
          _
      $region28: #{tpu_custom_call.1} parent=5 // pred_fallthru
        _
      %p1358 = scmp.le.s32.totalorder 2, %s22
      // Predicated region
      $region41: #{tpu_custom_call.1} parent=5 // pred_check
        %p1359 = pneg %p1358
      $region42: #{tpu_custom_call.1} parent=5 // pred_check_branch
        %1361 = sbr.rel (%p1359) target = $region44
      $region43: #{tpu_custom_call.1} parent=5 // pred_region
        %s1362 = ssub.s32 %s22, 2
        // Predicated region
        $region45: #{tpu_custom_call.1} parent=43 // pred_check
          %p1363 = pneg %p103
        $region46: #{tpu_custom_call.1} parent=43 // pred_check_branch
          %1365 = sbr.rel (%p1363) target = $region48
        $region47: #{tpu_custom_call.1} parent=43 // pred_region
          %s1366 = sand.u32 %s88, 1
          %s1367 = scalar_lea.sflag [#allocation6], %s1366
          %s1368 = sand.u32 %s88, 1
          %s1369 = smul.addr %s1368, 96
          %s1370 = scalar_lea.vmem [#allocation9], %s1369
          %1371 = dma.done %s1367, 1536
        $region48: #{tpu_custom_call.1} parent=43 // pred_fallthru
          _
      $region44: #{tpu_custom_call.1} parent=5 // pred_fallthru
        _
    $region6: #{tpu_custom_call.1} parent=1 // loop_footer
      %s26 = sadd.s32 1, %s22
    $region7: #{tpu_custom_call.1} parent=1 // loop_footer_branch
      %21 = sbr.rel target = $region3
    $region8: #{tpu_custom_call.1} parent=1 // loop_exit
      _
    %1372 = vsyncpa [#allocation5], 1
    %s1373 = scalar_lea.sflag [#allocation5], 1
    %1374 = vsyncpa %s1373, 1
    %1375 = vsyncpa [#allocation8], 1
    %s1376 = scalar_lea.sflag [#allocation8], 1
    %1377 = vsyncpa %s1376, 1
    %1378 = vsyncpa [#allocation6], 1
    %s1379 = scalar_lea.sflag [#allocation6], 1
    %1380 = vsyncpa %s1379, 1

</llo_original>
